<compile_context>
chip_gen: v5e
topology: v5e:2x2
jax: 0.10.0
libtpu: 0.0.40
codegen_flags: <defaults>
</compile_context>

<pallas_src>
import functools

import jax
import jax.numpy as jnp
from jax.experimental import pallas as pl
from jax.experimental.pallas import tpu as pltpu

_TARGET_BLOCK_ELEMS = 2048 * 512   # 4 MiB (f32) per input per pipeline buffer
_VMEM_LIMIT_BYTES = 32 << 20       # 2 inputs x 2 buffers x 4 MiB = 16 MiB + slack


def _mse_partial_kernel(p_ref, t_ref, out_ref, *, valid_rows, block_rows, need_mask):
    # Block-local sum of squared differences, reduced along the row (sublane)
    # axis only so the output stays lane-dense.  Upcast to f32 so bf16 inputs
    # still accumulate accurately.
    diff = p_ref[...].astype(jnp.float32) - t_ref[...].astype(jnp.float32)
    sq = diff * diff
    if need_mask:
        # Only the last block is ragged; this extra VPU work hides under DMA.
        row0 = pl.program_id(0) * block_rows
        rows = jax.lax.broadcasted_iota(jnp.int32, sq.shape, 0) + row0
        sq = jnp.where(rows < valid_rows, sq, 0.0)
    out_ref[...] = jnp.sum(sq, axis=0, keepdims=True).reshape(out_ref.shape)


def _pick_lane_width(n):
    for w in (512, 256, 128):
        if n % w == 0:
            return w
    return 128   # irregular total size -> rare small-pad path


def _grid_semantics(grid):
    """v7x with >=2 blocks: shard the grid across both TensorCores."""
    core_parallel = getattr(pltpu, "CORE_PARALLEL", None)
    if grid >= 2 and core_parallel is not None:
        try:
            kind = jax.devices()[0].device_kind.lower()
        except Exception:
            kind = ""
        if "v7" in kind or "tpu7" in kind:
            return (core_parallel,)
    return ("parallel",)


def skeleton_loss(pred, target, alpha=1.0, beta=0.1):
    """MSE loss (mean of squared error) — matches F.mse_loss(pred, target).

    alpha / beta are kept for signature parity with the PyTorch module; the
    reference forward returns only the MSE term.
    """
    assert pred.shape == target.shape
    n = pred.size
    w = _pick_lane_width(n)

    p_flat = pred.reshape(-1)
    t_flat = target.reshape(-1)
    pad = (-n) % w
    if pad:
        # Rare path (element count not a multiple of 128).  Both operands are
        # padded identically, so the padded region contributes zero error.
        p_flat = jnp.pad(p_flat, (0, pad))
        t_flat = jnp.pad(t_flat, (0, pad))
    m = (n + pad) // w

    max_block_rows = max(8, (_TARGET_BLOCK_ELEMS // w) // 8 * 8)
    if m <= max_block_rows:
        block_rows = m            # single block == full array dims (always legal)
    else:
        block_rows = max_block_rows
    grid = pl.cdiv(m, block_rows)
    need_mask = (m % block_rows) != 0

    p2 = p_flat.reshape(m, w)     # free reshape: no copy, no padding
    t2 = t_flat.reshape(m, w)

    kernel = functools.partial(
        _mse_partial_kernel,
        valid_rows=m, block_rows=block_rows, need_mask=need_mask)

    def run(dim_sems):
        return pl.pallas_call(
            kernel,
            out_shape=jax.ShapeDtypeStruct((grid, 1, w), jnp.float32),
            grid_spec=pltpu.PrefetchScalarGridSpec(
                num_scalar_prefetch=0,
                grid=(grid,),
                in_specs=[
                    pl.BlockSpec((block_rows, w), lambda i: (i, 0)),
                    pl.BlockSpec((block_rows, w), lambda i: (i, 0)),
                ],
                out_specs=pl.BlockSpec((1, 1, w), lambda i: (i, 0, 0)),
            ),
            compiler_params=pltpu.CompilerParams(
                dimension_semantics=dim_sems,
                vmem_limit_bytes=_VMEM_LIMIT_BYTES,
            ),
        )(p2, t2)

    dim_sems = _grid_semantics(grid)
    try:
        partials = run(dim_sems)
    except Exception:
        if dim_sems == ("parallel",):
            raise
        partials = run(("parallel",))   # safe fallback if CORE_PARALLEL rejected

    # Final cross-lane/grid reduce and normalization: tiny, do it in JAX.
    return jnp.sum(partials, dtype=jnp.float32) / jnp.float32(n)


if __name__ == "__main__":
    key = jax.random.PRNGKey(0)

    # Primary demo: NCHW input (batch=2, channels=4, spatial=16x16).
    k1, k2 = jax.random.split(key)
    pred = jax.random.normal(k1, (2, 4, 16, 16), dtype=jnp.float32)
    target = jax.random.normal(k2, (2, 4, 16, 16), dtype=jnp.float32)
    loss = skeleton_loss(pred, target)
    jax.block_until_ready(loss)
    ref = jnp.mean((pred - target) ** 2)
    assert jnp.allclose(loss, ref, rtol=1e-4, atol=1e-6), (loss, ref)

    # Sanity check: irregular element count (exercises the rare pad path).
    k3, k4 = jax.random.split(k1)
    p_odd = jax.random.normal(k3, (3, 5, 7, 11), dtype=jnp.float32)
    t_odd = jax.random.normal(k4, (3, 5, 7, 11), dtype=jnp.float32)
    loss_odd = skeleton_loss(p_odd, t_odd)
    jax.block_until_ready(loss_odd)
    ref_odd = jnp.mean((p_odd - t_odd) ** 2)
    assert jnp.allclose(loss_odd, ref_odd, rtol=1e-4, atol=1e-6), (loss_odd, ref_odd)

    # Sanity check: multi-block grid with a ragged last block (in-kernel mask).
    k5, k6 = jax.random.split(k2)
    p_big = jax.random.normal(k5, (1, 3, 720, 512), dtype=jnp.float32)
    t_big = jax.random.normal(k6, (1, 3, 720, 512), dtype=jnp.float32)
    loss_big = skeleton_loss(p_big, t_big)
    jax.block_until_ready(loss_big)
    ref_big = jnp.mean((p_big - t_big) ** 2)
    assert jnp.allclose(loss_big, ref_big, rtol=1e-4, atol=1e-6), (loss_big, ref_big)

    print("KERNEL_OK")
</pallas_src>

<mosaic_0001>
module attributes {stable_mosaic.version = 11 : i64} {
  func.func @_mse_partial_kernel(%arg0: i32, %arg1: memref<4x512xf32, #tpu.memory_space<vmem>>, %arg2: memref<4x512xf32, #tpu.memory_space<vmem>>, %arg3: memref<1x1x512xf32, #tpu.memory_space<vmem>>) attributes {dimension_semantics = [#tpu.dimension_semantics<parallel>], iteration_bounds = array<i64: 1>, scalar_prefetch = 0 : i64, scratch_operands = 0 : i64, tpu.core_type = #tpu.core_type<tc>, window_params = [{transform_indices = @transform_0, window_bounds = array<i64: 4, 512>}, {transform_indices = @transform_1, window_bounds = array<i64: 4, 512>}, {transform_indices = @transform_2, window_bounds = array<i64: 1, 1, 512>}]} {
    %c0 = arith.constant 0 : index
    %c0_0 = arith.constant 0 : index
    %0 = vector.load %arg1[%c0, %c0_0] : memref<4x512xf32, #tpu.memory_space<vmem>>, vector<4x512xf32>
    %c0_1 = arith.constant 0 : index
    %c0_2 = arith.constant 0 : index
    %1 = vector.load %arg2[%c0_1, %c0_2] : memref<4x512xf32, #tpu.memory_space<vmem>>, vector<4x512xf32>
    %2 = arith.subf %0, %1 : vector<4x512xf32>
    %3 = arith.mulf %2, %2 : vector<4x512xf32>
    %cst = arith.constant dense<0.000000e+00> : vector<512xf32>
    %4 = vector.multi_reduction <add>, %3, %cst [0] : vector<4x512xf32> to vector<512xf32>
    %5 = vector.shape_cast %4 : vector<512xf32> to vector<1x512xf32>
    %6 = vector.shape_cast %5 : vector<1x512xf32> to vector<1x1x512xf32>
    %c0_3 = arith.constant 0 : index
    %c0_4 = arith.constant 0 : index
    %c0_5 = arith.constant 0 : index
    %7 = vector.load %arg3[%c0_3, %c0_4, %c0_5] : memref<1x1x512xf32, #tpu.memory_space<vmem>>, vector<1x1x512xf32>
    tpu.vector_store %arg3[%c0_3, %c0_4, %c0_5], %6 {strides = array<i32>} : memref<1x1x512xf32, #tpu.memory_space<vmem>>, vector<1x1x512xf32>,
    return
  }
  func.func @transform_0(%arg0: i32) -> (i32, i32) {
    %c0_i32 = arith.constant 0 : i32
    %c0_i32_0 = arith.constant 0 : i32
    return %arg0, %c0_i32 : i32, i32
  }
  func.func @transform_1(%arg0: i32) -> (i32, i32) {
    %c0_i32 = arith.constant 0 : i32
    %c0_i32_0 = arith.constant 0 : i32
    return %arg0, %c0_i32 : i32, i32
  }
  func.func @transform_2(%arg0: i32) -> (i32, i32, i32) {
    %c0_i32 = arith.constant 0 : i32
    %c0_i32_0 = arith.constant 0 : i32
    %c0_i32_1 = arith.constant 0 : i32
    return %arg0, %c0_i32, %c0_i32_0 : i32, i32, i32
  }
}

</mosaic_0001>

<llo_original>
// kernel: tpu_custom_call.1
$region0: #{tpu_custom_call.1}
  #allocation0 [shape = 'u32[]', space=smem, size = 0x4, offset = 0x4, fixed_abs, tag = 'smem constant byte address 0x4 - core index']
  #allocation1 [shape = 'u32[72,128]{1,0:T(1,128)}', space=vmem, size = 0x9000, scoped, tag = 'internal scratch']
  %s0 = inlined_call_operand.hbm [shape: f32[4,512], index: 0, kind: input, shape index: {}]
  %s1 = inlined_call_operand.hbm [shape: f32[4,512], index: 1, kind: input, shape index: {}]
  %s2 = inlined_call_operand.hbm [shape: f32[1,1,512], index: 2, kind: output, shape index: {}]
  %s3 = sld [smem:[#allocation0]]
  $region26: #{tpu_custom_call.1} parent=0
    _
  %s5 = ssub.s32 1, %s3
  %s6 = scalar_select 0, %s5, %s3
  $region1: #{tpu_custom_call.1} parent=0
    #allocation2 [shape = 'u8[8192]{0}', space=vmem, size = 0x2000, scoped, tag = 'input window, operand 0, single buffered']
    #allocation3 [shape = 's32[1]{0}', space=sflag, size = 0x4, scoped, tag = 'scoped memory for tpu_custom_call.1']
    #allocation4 [shape = 's32[1]{0}', space=sflag, size = 0x4, scoped, tag = 'scoped memory for tpu_custom_call.1']
    #allocation5 [shape = 'u8[8192]{0}', space=vmem, size = 0x2000, scoped, tag = 'input window, operand 1, single buffered']
    #allocation6 [shape = 's32[1]{0}', space=sflag, size = 0x4, scoped, tag = 'scoped memory for tpu_custom_call.1']
    #allocation7 [shape = 'u8[2048]{0}', space=vmem, size = 0x800, scoped, tag = 'output window, operand 0, single buffered']
    %7 = vsyncpa [#allocation3], 0
    %8 = vsyncpa [#allocation6], 0
    %9 = vsyncpa [#allocation4], 0
    // Predicated region
    $region2: #{tpu_custom_call.1} parent=1 // pred_check
      _
    $region3: #{tpu_custom_call.1} parent=1 // pred_check_branch
      %11 = sbr.rel (0) target = $region5
    $region4: #{tpu_custom_call.1} parent=1 // pred_region
      %13 = vsyncadd [#allocation3], 0
      %s15 = sshll.u32 %s0, 4
      %s16 = int_to_ptr.hbm [resolvable:$true] %s15
      %s17 = sshll.u32 [#allocation2], 4
      %s18 = int_to_ptr.vmem [resolvable:$true] %s17
      %20 = dma.hbm_to_vmem [thread:$0]  %s16, 256, %s18, [#allocation3]
    $region5: #{tpu_custom_call.1} parent=1 // pred_fallthru
      _
    // Predicated region
    $region6: #{tpu_custom_call.1} parent=1 // pred_check
      _
    $region7: #{tpu_custom_call.1} parent=1 // pred_check_branch
      %22 = sbr.rel (0) target = $region9
    $region8: #{tpu_custom_call.1} parent=1 // pred_region
      %24 = vsyncadd [#allocation6], 0
      %s26 = sshll.u32 %s1, 4
      %s27 = int_to_ptr.hbm [resolvable:$true] %s26
      %s28 = sshll.u32 [#allocation5], 4
      %s29 = int_to_ptr.vmem [resolvable:$true] %s28
      %31 = dma.hbm_to_vmem [thread:$0]  %s27, 256, %s29, [#allocation6]
    $region9: #{tpu_custom_call.1} parent=1 // pred_fallthru
      _
    // Predicated region
    $region10: #{tpu_custom_call.1} parent=1 // pred_check
      _
    $region11: #{tpu_custom_call.1} parent=1 // pred_check_branch
      %33 = sbr.rel (0) target = $region13
    $region12: #{tpu_custom_call.1} parent=1 // pred_region
      %35 = dma.done [#allocation3], 256
    $region13: #{tpu_custom_call.1} parent=1 // pred_fallthru
      _
    // Predicated region
    $region14: #{tpu_custom_call.1} parent=1 // pred_check
      _
    $region15: #{tpu_custom_call.1} parent=1 // pred_check_branch
      %37 = sbr.rel (0) target = $region17
    $region16: #{tpu_custom_call.1} parent=1 // pred_region
      %39 = dma.done [#allocation6], 256
    $region17: #{tpu_custom_call.1} parent=1 // pred_fallthru
      _
    %v40 = vld [vmem:[#allocation2] sm:$0xff]
    %v41 = vld [vmem:[#allocation2 + $0x8] sm:$0xff]
    %v42 = vld [vmem:[#allocation5] sm:$0xff]
    %v43 = vld [vmem:[#allocation5 + $0x8] sm:$0xff]
    %v44 = vsub.f32 %v40, %v42
    %v45 = vsub.f32 %v41, %v43
    %v46 = vmul.f32 %v44, %v44
    %v47 = vmul.f32 %v45, %v45
    %50 = vst [vmem:[#allocation1] ss:$2 sm:$0xff] %v46
    %s51 = scalar_lea.vmem [#allocation1], 16
    %52 = vst [vmem:[%s51] ss:$2 sm:$0xff] %v47
    %v53 = vld.sshfl [vmem:[#allocation1] sm:$0xff pattern:$0x75316420]
    %v54 = vld.sshfl [vmem:[#allocation1 + $0x8] sm:$0xff pattern:$0x75316420]
    %v55 = vld.sshfl [vmem:[#allocation1 + $0x10] sm:$0xff pattern:$0x75316420]
    %v56 = vld.sshfl [vmem:[#allocation1 + $0x18] sm:$0xff pattern:$0x75316420]
    %vm61 = vcmask 1043456
    %v62 = vsel %vm61, %v53, 0.0
    %v63 = vrot.slane %v62, 4
    %v64 = vadd.f32 %v62, %v63
    %v65 = vrot.slane %v64, 2
    %v66 = vadd.f32 %v64, %v65
    %v67 = vrot.slane %v66, 1
    %v68 = vadd.f32 %v66, %v67
    %v69 = vsel %vm61, %v54, 0.0
    %v70 = vrot.slane %v69, 4
    %v71 = vadd.f32 %v69, %v70
    %v72 = vrot.slane %v71, 2
    %v73 = vadd.f32 %v71, %v72
    %v74 = vrot.slane %v73, 1
    %v75 = vadd.f32 %v73, %v74
    %v76 = vsel %vm61, %v55, 0.0
    %v77 = vrot.slane %v76, 4
    %v78 = vadd.f32 %v76, %v77
    %v79 = vrot.slane %v78, 2
    %v80 = vadd.f32 %v78, %v79
    %v81 = vrot.slane %v80, 1
    %v82 = vadd.f32 %v80, %v81
    %v83 = vsel %vm61, %v56, 0.0
    %v84 = vrot.slane %v83, 4
    %v85 = vadd.f32 %v83, %v84
    %v86 = vrot.slane %v85, 2
    %v87 = vadd.f32 %v85, %v86
    %v88 = vrot.slane %v87, 1
    %v89 = vadd.f32 %v87, %v88
    %v94 = vrot.slane %v75, 7
    %v95 = vrot.slane %v82, 6
    %v96 = vrot.slane %v89, 5
    %vm97 = vcmask 1040384
    %v98 = vsel %vm97, %v68, %v94
    %vm99 = vcmask 1042434
    %v100 = vsel %vm99, %v95, %v96
    %vm101 = vcmask 1041408
    %v102 = vsel %vm101, %v98, %v100
    %v104 = vlaneseq
    %vm105 = vcmp.ge.s32.totalorder %v104, 0
    %vm106 = vcmp.lt.s32.totalorder %v104, 512
    %vm107 = vmand %vm105, %vm106
    %108 = vst.msk [vmem:[#allocation7] sm:$0xf] %vm107, %v102
    // Predicated region
    $region18: #{tpu_custom_call.1} parent=1 // pred_check
      _
    $region19: #{tpu_custom_call.1} parent=1 // pred_check_branch
      %110 = sbr.rel (0) target = $region21
    $region20: #{tpu_custom_call.1} parent=1 // pred_region
      %112 = vsyncadd [#allocation4], 0
      %s114 = sshll.u32 [#allocation7], 4
      %s115 = int_to_ptr.vmem [resolvable:$true] %s114
      %s116 = sshll.u32 %s2, 4
      %s117 = int_to_ptr.hbm [resolvable:$true] %s116
      %119 = dma.vmem_to_hbm [thread:$0]  %s115, 64, %s117, [#allocation4]
    $region21: #{tpu_custom_call.1} parent=1 // pred_fallthru
      _
    // Predicated region
    $region22: #{tpu_custom_call.1} parent=1 // pred_check
      _
    $region23: #{tpu_custom_call.1} parent=1 // pred_check_branch
      %121 = sbr.rel (0) target = $region25
    $region24: #{tpu_custom_call.1} parent=1 // pred_region
      %123 = dma.done [#allocation4], 64
    $region25: #{tpu_custom_call.1} parent=1 // pred_fallthru
      _
    %124 = vsyncpa [#allocation3], 1
    %125 = vsyncpa [#allocation6], 1
    %126 = vsyncpa [#allocation4], 1

</llo_original>
